<compile_context>
chip_gen: v5e
topology: v5e:2x2
jax: 0.10.0
libtpu: 0.0.40
codegen_flags: <defaults>
</compile_context>

<pallas_src>
import functools
import math

import jax
import jax.numpy as jnp
from jax import lax
from jax.experimental import pallas as pl
from jax.experimental.pallas import tpu as pltpu


# --------------------------- small static helpers ---------------------------
def _pick_row_tile(R):
    for t in (512, 256, 128, 64, 32, 16, 8):
        if R % t == 0:
            return t
    return R


def _pick_chunk(L, K):
    for t in (32, 16, 8):
        if L % t == 0 and t >= K - 1:
            return t
    return L


def _silu(x):
    # exact silu; exp(-x)->inf for very negative x gives x/inf -> -0.0 (== silu limit)
    return x / (1.0 + jnp.exp(-x))


# -------------- row-tiled fused LayerNorm + Linear (LN feeds MXU) -----------
def _ln_linear_kernel(x_ref, g_ref, be_ref, w_ref, b_ref, o_ref):
    x = x_ref[...]
    mu = jnp.mean(x, axis=-1, keepdims=True)
    xc = x - mu
    var = jnp.mean(xc * xc, axis=-1, keepdims=True)
    xn = xc * lax.rsqrt(var + 1e-5) * g_ref[...] + be_ref[...]
    acc = jnp.dot(xn.astype(jnp.bfloat16), w_ref[...],
                  preferred_element_type=jnp.float32) + b_ref[...]
    o_ref[...] = acc.astype(o_ref.dtype)


def ln_linear(x2d, gamma, beta, w_bf, b=None):
    """LayerNorm(x2d) @ w_bf + b  -> bf16.  x2d f32 (R,K); w_bf bf16 (K,M)."""
    R, K = x2d.shape
    M = w_bf.shape[1]
    bias = jnp.zeros((1, M), jnp.float32) if b is None else b.reshape(1, M).astype(jnp.float32)
    TM = _pick_row_tile(R)
    assert R % TM == 0
    return pl.pallas_call(
        _ln_linear_kernel,
        grid=(R // TM,),
        in_specs=[
            pl.BlockSpec((TM, K), lambda i: (i, 0)),
            pl.BlockSpec((1, K), lambda i: (0, 0)),
            pl.BlockSpec((1, K), lambda i: (0, 0)),
            pl.BlockSpec((K, M), lambda i: (0, 0)),
            pl.BlockSpec((1, M), lambda i: (0, 0)),
        ],
        out_specs=pl.BlockSpec((TM, M), lambda i: (i, 0)),
        out_shape=jax.ShapeDtypeStruct((R, M), jnp.bfloat16),
        compiler_params=pltpu.CompilerParams(dimension_semantics=("parallel",)),
    )(x2d, gamma.reshape(1, K), beta.reshape(1, K), w_bf, bias)


# ---------- (y_f + y_b) @ W_out + residual  (out_proj, residual fused) ------
def _add2_linear_res_kernel(a_ref, b_ref, w_ref, r_ref, o_ref):
    s = (a_ref[...].astype(jnp.float32) + b_ref[...].astype(jnp.float32)).astype(jnp.bfloat16)
    o_ref[...] = jnp.dot(s, w_ref[...], preferred_element_type=jnp.float32) + r_ref[...]


def add2_linear_res(a, b, w_bf, res):
    R, K = a.shape
    M = w_bf.shape[1]
    TM = _pick_row_tile(R)
    return pl.pallas_call(
        _add2_linear_res_kernel,
        grid=(R // TM,),
        in_specs=[
            pl.BlockSpec((TM, K), lambda i: (i, 0)),
            pl.BlockSpec((TM, K), lambda i: (i, 0)),
            pl.BlockSpec((K, M), lambda i: (0, 0)),
            pl.BlockSpec((TM, M), lambda i: (i, 0)),
        ],
        out_specs=pl.BlockSpec((TM, M), lambda i: (i, 0)),
        out_shape=jax.ShapeDtypeStruct((R, M), jnp.float32),
        compiler_params=pltpu.CompilerParams(dimension_semantics=("parallel",)),
    )(a, b, w_bf, res)


# ----------------- x @ W + bias + residual  (fc2, residual fused) -----------
def _linear_res_kernel(x_ref, w_ref, b_ref, r_ref, o_ref):
    o_ref[...] = (jnp.dot(x_ref[...], w_ref[...], preferred_element_type=jnp.float32)
                  + b_ref[...] + r_ref[...])


def linear_res(x_bf, w_bf, b, res):
    R, K = x_bf.shape
    M = w_bf.shape[1]
    TM = _pick_row_tile(R)
    return pl.pallas_call(
        _linear_res_kernel,
        grid=(R // TM,),
        in_specs=[
            pl.BlockSpec((TM, K), lambda i: (i, 0)),
            pl.BlockSpec((K, M), lambda i: (0, 0)),
            pl.BlockSpec((1, M), lambda i: (0, 0)),
            pl.BlockSpec((TM, M), lambda i: (i, 0)),
        ],
        out_specs=pl.BlockSpec((TM, M), lambda i: (i, 0)),
        out_shape=jax.ShapeDtypeStruct((R, M), jnp.float32),
        compiler_params=pltpu.CompilerParams(dimension_semantics=("parallel",)),
    )(x_bf, w_bf, b.reshape(1, M).astype(jnp.float32), res)


# ----------- fused Mamba inner kernel: conv1d+SiLU -> x_proj -> scan ---------
def _mamba_inner_kernel(xz_ref, cw_ref, cb_ref, wc_ref, A_ref, dtb_ref, Dv_ref,
                        o_ref, tail, h_ref, *, K, reverse):
    T, D = o_ref.shape[1], o_ref.shape[2]
    N = A_ref.shape[0]                       # A_T is (N, D): d_inner on lanes
    l = pl.program_id(1)

    @pl.when(l == 0)
    def _():
        tail[...] = jnp.zeros_like(tail)     # conv zero padding at sequence edge
        h_ref[...] = jnp.zeros_like(h_ref)   # SSM initial state

    xz = xz_ref[0].astype(jnp.float32)       # (T, 2D): x | z split in-kernel
    x = xz[:, :D]
    z = xz[:, D:]

    # Causal depthwise conv1d (+SiLU).  For the reverse (bimamba) branch the
    # taps are pre-flipped so it is the anti-causal conv on the original order;
    # the carried tail holds left-(fwd) / right-(bwd) neighbour context.
    tail_v = tail[...]
    if not reverse:
        xw = jnp.concatenate([tail_v, x], axis=0)          # (K-1+T, D)
        tail[...] = x[T - (K - 1):, :]
    else:
        xw = jnp.concatenate([x, tail_v], axis=0)
        tail[...] = x[:K - 1, :]
    acc = jnp.zeros((T, D), jnp.float32) + cb_ref[...]
    for k in range(K):
        acc = acc + cw_ref[k:k + 1, :] * xw[k:k + T, :]
    u = _silu(acc)                                           # (T, D)

    # x_proj with dt_proj folded in (bf16 MXU, f32 acc); cols = [dt(D)|B(N)|C(N)]
    xdbl = jnp.dot(u.astype(jnp.bfloat16), wc_ref[...],
                   preferred_element_type=jnp.float32)       # (T, D+2N)
    dt = xdbl[:, :D] + dtb_ref[...]
    delta = jnp.maximum(dt, 0.0) + jnp.log(1.0 + jnp.exp(-jnp.abs(dt)))  # softplus
    Bt = xdbl[:, D:D + N].T                                  # (N, T)  d_state on sublanes
    Ct = xdbl[:, D + N:D + 2 * N].T                          # (N, T)
    du = delta * u                                           # (T, D)
    A_T = A_ref[...]                                         # (N, D)

    # Selective scan: state carried in registers, fully unrolled, static slices.
    h = h_ref[...]
    y_rows = [None] * T
    order = range(T - 1, -1, -1) if reverse else range(T)
    for t in order:
        dA_t = jnp.exp(delta[t:t + 1, :] * A_T)              # (N, D)
        dBu_t = du[t:t + 1, :] * Bt[:, t:t + 1]               # (N, D)
        h = dA_t * h + dBu_t
        y_rows[t] = jnp.sum(h * Ct[:, t:t + 1], axis=0, keepdims=True)   # (1, D)
    h_ref[...] = h
    y = jnp.concatenate(y_rows, axis=0)                      # (T, D), one batched store

    # D skip connection + silu(z) gating.
    o_ref[0] = ((y + u * Dv_ref[...]) * _silu(z)).astype(o_ref.dtype)


def mamba_inner(xz, conv_w, conv_b, wcomb_bf, A_T, dt_bias, Dvec, *, reverse):
    """conv1d+SiLU + x_proj(+folded dt_proj) + selective scan + gating.

    xz: (B, L, 2D) bf16 (x|z concatenated); conv_w: (K, D) f32 (pre-flipped for
    the reverse branch); wcomb_bf: (D, D+2N) bf16; A_T: (N, D) f32.
    Output (B, L, D) bf16 in original sequence order for both directions.
    """
    B, L, twoD = xz.shape
    D = twoD // 2
    N = A_T.shape[0]
    K = conv_w.shape[0]
    T = _pick_chunk(L, K)
    assert L % T == 0 and T >= K - 1
    nL = L // T
    M2 = wcomb_bf.shape[1]

    if reverse:
        seq = lambda b, l: (b, nL - 1 - l, 0)
    else:
        seq = lambda b, l: (b, l, 0)

    kernel = functools.partial(_mamba_inner_kernel, K=K, reverse=reverse)
    return pl.pallas_call(
        kernel,
        grid=(B, nL),
        in_specs=[
            pl.BlockSpec((1, T, twoD), seq),                  # xz chunk (x|z)
            pl.BlockSpec((K, D), lambda b, l: (0, 0)),        # conv taps
            pl.BlockSpec((1, D), lambda b, l: (0, 0)),        # conv bias
            pl.BlockSpec((D, M2), lambda b, l: (0, 0)),       # x_proj(+dt) W^T (bf16)
            pl.BlockSpec((N, D), lambda b, l: (0, 0)),        # A^T (d_inner on lanes)
            pl.BlockSpec((1, D), lambda b, l: (0, 0)),        # dt bias
            pl.BlockSpec((1, D), lambda b, l: (0, 0)),        # D skip
        ],
        out_specs=pl.BlockSpec((1, T, D), seq),
        out_shape=jax.ShapeDtypeStruct((B, L, D), jnp.bfloat16),
        scratch_shapes=[
            pltpu.VMEM((K - 1, D), jnp.float32),   # carried conv tail
            pltpu.VMEM((N, D), jnp.float32),       # carried SSM state h
        ],
        compiler_params=pltpu.CompilerParams(
            dimension_semantics=("parallel", "arbitrary")),
    )(xz, conv_w, conv_b.reshape(1, D), wcomb_bf, A_T,
      dt_bias.reshape(1, D), Dvec.reshape(1, D))


# ---------------------- Depthwise 3x3x3 conv (DWConv) -----------------------
def _dwconv3d_kernel(x_ref, w_ref, b_ref, o_ref, xpad):
    # x: (1, nf, H, W, C) bf16; padding done in-kernel (no jnp.pad HBM round trip)
    nf, H, W, C = o_ref.shape[1], o_ref.shape[2], o_ref.shape[3], o_ref.shape[4]
    xpad[...] = jnp.zeros(xpad.shape, jnp.float32)
    xpad[1:nf + 1, 1:H + 1, 1:W + 1, :] = x_ref[0].astype(jnp.float32)
    acc = jnp.zeros((nf, H, W, C), jnp.float32)
    for kd in range(3):
        for kh in range(3):
            for kw in range(3):
                idx = kd * 9 + kh * 3 + kw
                acc = acc + (w_ref[idx:idx + 1, :]
                             * xpad[kd:kd + nf, kh:kh + H, kw:kw + W, :])
    o_ref[0] = (acc + b_ref[...]).astype(o_ref.dtype)


def dwconv3d(x5, w27, b):
    # x5: (B, nf, H, W, C) NDHWC bf16; w27: (27, C) flattened 3x3x3 depthwise taps
    # TODO(synk): tile spatially with halos for large volumes (whole-volume block
    # per batch only fits VMEM at small nf/H/W; fine for this module's sizes).
    B, nf, H, W, C = x5.shape
    return pl.pallas_call(
        _dwconv3d_kernel,
        grid=(B,),
        in_specs=[
            pl.BlockSpec((1, nf, H, W, C), lambda b: (b, 0, 0, 0, 0)),
            pl.BlockSpec((27, C), lambda b: (0, 0)),
            pl.BlockSpec((1, C), lambda b: (0, 0)),
        ],
        out_specs=pl.BlockSpec((1, nf, H, W, C), lambda b: (b, 0, 0, 0, 0)),
        out_shape=jax.ShapeDtypeStruct((B, nf, H, W, C), jnp.bfloat16),
        scratch_shapes=[pltpu.VMEM((nf + 2, H + 2, W + 2, C), jnp.float32)],
        compiler_params=pltpu.CompilerParams(dimension_semantics=("parallel",)),
    )(x5, w27, b.reshape(1, C))


# ------------------------------- Mamba (bimamba v2) -------------------------
def mamba_forward(hs, p):
    """hs: (B, L, C) f32 residual stream. Returns hs + out_proj(y_f + y_b)."""
    B, L, C = hs.shape
    D = p['d_inner']
    hs2 = hs.reshape(B * L, C)
    # norm1 fused into the (bias-free) in_proj matmul; xz kept bf16
    xz = ln_linear(hs2, p['norm1_w'], p['norm1_b'], p['in_proj_wT_bf']).reshape(B, L, 2 * D)
    y_f = mamba_inner(xz, p['fwd_conv_w'], p['fwd_conv_b'], p['fwd_wcomb_T_bf'],
                      p['fwd_A_T'], p['fwd_dt_proj_b'], p['fwd_D'], reverse=False)
    # bimamba-v2 backward branch: sequence reversal handled inside the kernel
    y_b = mamba_inner(xz, p['bwd_conv_w_flip'], p['bwd_conv_b'], p['bwd_wcomb_T_bf'],
                      p['bwd_A_T'], p['bwd_dt_proj_b'], p['bwd_D'], reverse=True)
    # y_f + y_b, out_proj, and the residual add all fused in one kernel
    return add2_linear_res(y_f.reshape(B * L, D), y_b.reshape(B * L, D),
                           p['out_proj_wT_bf'], hs2).reshape(B, L, C)


# ------------------------------------ MLP -----------------------------------
def mlp_forward(x, p, nf, H, W):
    """x: (B, N, C) f32 residual stream. Returns x + fc2(gelu(dwconv(fc1(norm2(x)))))."""
    B, Nn, C = x.shape
    hidden = p['mlp_hidden']
    x2 = x.reshape(B * Nn, C)
    h = ln_linear(x2, p['norm2_w'], p['norm2_b'], p['fc1_wT_bf'], p['fc1_b'])   # bf16
    c = dwconv3d(h.reshape(B, nf, H, W, hidden), p['dw_w'], p['dw_b'])          # bf16
    # exact (erf) GELU kept as XLA glue (no guaranteed Mosaic erf lowering)
    c = jax.nn.gelu(c.astype(jnp.float32), approximate=False).astype(jnp.bfloat16)
    # fc2 + residual fused
    return linear_res(c.reshape(B * Nn, hidden), p['fc2_wT_bf'], p['fc2_b'],
                      x2).reshape(B, Nn, C)


# --------------------------- MambaLayerlocal forward ------------------------
def mamba_layer_local_forward(x, hilbert_curve, inv_curve, p):
    # x: (B, nf, C, H, W); module's reverse=True path (as in the reference)
    B, nf, C, H, W = x.shape
    assert C == p['dim']
    N = H * W * nf
    # (B, nf, C, H, W) -> (B, H, W, nf, C) -> (B, N, C): token order (h, w, f),
    # identical to flatten(2) of the (B, C, H, W, nf) layout in the reference.
    x_seq = jnp.transpose(x, (0, 3, 4, 1, 2)).reshape(B, N, C)
    x_flat = jnp.take(x_seq, hilbert_curve, axis=1)           # hilbert gather, C contiguous

    x_mamba = mamba_forward(x_flat, p)                        # residual add fused in-kernel
    x_out = mlp_forward(x_mamba, p, nf, H, W)                 # residual add fused in-kernel

    # scatter_add by a permutation == gather by its inverse (argsort hoisted)
    out_seq = jnp.take(x_out, inv_curve, axis=1)              # (B, N, C)
    out = out_seq.reshape(B, H, W, nf, C)
    return jnp.transpose(out, (0, 3, 4, 1, 2))                # (B, nf, C, H, W)


# ---------------------------- deterministic params --------------------------
def init_params(key, dim=8, d_state=16, d_conv=4, expand=2, mlp_ratio=4):
    d_inner = expand * dim
    dt_rank = math.ceil(dim / 16)
    hidden = int(dim * mlp_ratio)
    keys = iter(jax.random.split(key, 24))
    nrm = lambda kk, shp, std=0.02: std * jax.random.normal(kk, shp, dtype=jnp.float32)

    p = dict(dim=dim, d_state=d_state, d_conv=d_conv, d_inner=d_inner,
             dt_rank=dt_rank, mlp_hidden=hidden)
    p['norm1_w'] = jnp.ones((dim,), jnp.float32)
    p['norm1_b'] = jnp.zeros((dim,), jnp.float32)
    p['norm2_w'] = jnp.ones((dim,), jnp.float32)
    p['norm2_b'] = jnp.zeros((dim,), jnp.float32)
    p['in_proj_w'] = nrm(next(keys), (2 * d_inner, dim))          # no bias
    p['out_proj_w'] = nrm(next(keys), (dim, d_inner))             # no bias
    A_log = jnp.log(jnp.broadcast_to(
        jnp.arange(1, d_state + 1, dtype=jnp.float32), (d_inner, d_state)))
    for pre in ('fwd_', 'bwd_'):
        p[pre + 'conv_w'] = nrm(next(keys), (d_conv, d_inner), std=0.1)   # (K, D)
        p[pre + 'conv_b'] = nrm(next(keys), (d_inner,), std=0.1)
        p[pre + 'x_proj_w'] = nrm(next(keys), (dt_rank + 2 * d_state, d_inner))
        p[pre + 'dt_proj_w'] = nrm(next(keys), (d_inner, dt_rank), std=0.1)
        p[pre + 'dt_proj_b'] = jax.random.uniform(next(keys), (d_inner,),
                                                  jnp.float32, -0.1, 0.1)
        p[pre + 'A_log'] = A_log
        p[pre + 'D'] = jnp.ones((d_inner,), jnp.float32)
    p['fc1_w'] = nrm(next(keys), (hidden, dim))
    p['fc1_b'] = jnp.zeros((hidden,), jnp.float32)
    p['fc2_w'] = nrm(next(keys), (dim, hidden))
    p['fc2_b'] = jnp.zeros((dim,), jnp.float32)
    p['dw_w'] = nrm(next(keys), (27, hidden), std=0.1)   # 3x3x3 depthwise taps
    p['dw_b'] = jnp.zeros((hidden,), jnp.float32)
    return p


def prepare_params(p):
    """One-time fold/transpose/cast of weights into the layouts the kernels consume."""
    dp = dict(p)
    dp['in_proj_wT_bf'] = p['in_proj_w'].T.astype(jnp.bfloat16)
    dp['out_proj_wT_bf'] = p['out_proj_w'].T.astype(jnp.bfloat16)
    dp['fc1_wT_bf'] = p['fc1_w'].T.astype(jnp.bfloat16)
    dp['fc2_wT_bf'] = p['fc2_w'].T.astype(jnp.bfloat16)
    dt_rank = p['dt_rank']
    for pre in ('fwd_', 'bwd_'):
        xw = p[pre + 'x_proj_w']                  # (dt_rank + 2N, d_inner)
        dtw = p[pre + 'dt_proj_w']                # (d_inner, dt_rank)
        w_dt = dtw @ xw[:dt_rank]                 # fold dt_proj into x_proj
        dp[pre + 'wcomb_T_bf'] = jnp.concatenate(
            [w_dt, xw[dt_rank:]], axis=0).T.astype(jnp.bfloat16)   # (D, D+2N)
        dp[pre + 'A_T'] = (-jnp.exp(p[pre + 'A_log'])).T            # (N, D): D on lanes
    dp['bwd_conv_w_flip'] = p['bwd_conv_w'][::-1]  # anti-causal taps for reverse branch
    return dp


if __name__ == "__main__":
    key = jax.random.PRNGKey(0)
    kx, kh, kp = jax.random.split(key, 3)

    B, nf, dim, H, W = 2, 4, 8, 4, 4
    params = prepare_params(init_params(kp, dim=dim))
    x = jax.random.normal(kx, (B, nf, dim, H, W), dtype=jnp.float32)
    hilbert_curve = jax.random.permutation(kh, H * W * nf).astype(jnp.int32)
    inv_curve = jnp.argsort(hilbert_curve)          # hoisted out of the forward

    out = mamba_layer_local_forward(x, hilbert_curve, inv_curve, params)
    jax.block_until_ready(out)
    assert out.shape == (B, nf, dim, H, W)
    print("KERNEL_OK")
</pallas_src>

<mosaic_0001>
module attributes {stable_mosaic.version = 11 : i64} {
  func.func @_ln_linear_kernel(%arg0: i32, %arg1: memref<128x8xf32, #tpu.memory_space<vmem>>, %arg2: memref<1x8xf32, #tpu.memory_space<vmem>>, %arg3: memref<1x8xf32, #tpu.memory_space<vmem>>, %arg4: memref<8x32xbf16, #tpu.memory_space<vmem>>, %arg5: memref<1x32xf32, #tpu.memory_space<vmem>>, %arg6: memref<128x32xbf16, #tpu.memory_space<vmem>>) attributes {dimension_semantics = [#tpu.dimension_semantics<parallel>], iteration_bounds = array<i64: 1>, scalar_prefetch = 0 : i64, scratch_operands = 0 : i64, tpu.core_type = #tpu.core_type<tc>, window_params = [{transform_indices = @transform_0, window_bounds = array<i64: 128, 8>}, {pipeline_mode = #tpu.pipeline_mode<synchronous>, transform_indices = @transform_1, window_bounds = array<i64: 1, 8>}, {pipeline_mode = #tpu.pipeline_mode<synchronous>, transform_indices = @transform_2, window_bounds = array<i64: 1, 8>}, {pipeline_mode = #tpu.pipeline_mode<synchronous>, transform_indices = @transform_3, window_bounds = array<i64: 8, 32>}, {pipeline_mode = #tpu.pipeline_mode<synchronous>, transform_indices = @transform_4, window_bounds = array<i64: 1, 32>}, {transform_indices = @transform_5, window_bounds = array<i64: 128, 32>}]} {
    %c0 = arith.constant 0 : index
    %c0_0 = arith.constant 0 : index
    %0 = vector.load %arg1[%c0, %c0_0] : memref<128x8xf32, #tpu.memory_space<vmem>>, vector<128x8xf32>
    %cst = arith.constant dense<0.000000e+00> : vector<128xf32>
    %1 = vector.multi_reduction <add>, %0, %cst [1] : vector<128x8xf32> to vector<128xf32>
    %2 = vector.shape_cast %1 : vector<128xf32> to vector<128x1xf32>
    %cst_1 = arith.constant 8.000000e+00 : f32
    %3 = vector.broadcast %cst_1 : f32 to vector<128x1xf32>
    %4 = arith.divf %2, %3 : vector<128x1xf32>
    %5 = vector.broadcast %4 : vector<128x1xf32> to vector<128x8xf32>
    %6 = arith.subf %0, %5 : vector<128x8xf32>
    %7 = arith.mulf %6, %6 : vector<128x8xf32>
    %cst_2 = arith.constant dense<0.000000e+00> : vector<128xf32>
    %8 = vector.multi_reduction <add>, %7, %cst_2 [1] : vector<128x8xf32> to vector<128xf32>
    %9 = vector.shape_cast %8 : vector<128xf32> to vector<128x1xf32>
    %cst_3 = arith.constant 8.000000e+00 : f32
    %10 = vector.broadcast %cst_3 : f32 to vector<128x1xf32>
    %11 = arith.divf %9, %10 : vector<128x1xf32>
    %cst_4 = arith.constant 9.99999974E-6 : f32
    %12 = vector.broadcast %cst_4 : f32 to vector<128x1xf32>
    %13 = arith.addf %11, %12 : vector<128x1xf32>
    %14 = math.rsqrt %13 : vector<128x1xf32>
    %15 = vector.broadcast %14 : vector<128x1xf32> to vector<128x8xf32>
    %16 = arith.mulf %6, %15 : vector<128x8xf32>
    %c0_5 = arith.constant 0 : index
    %c0_6 = arith.constant 0 : index
    %17 = vector.load %arg2[%c0_5, %c0_6] : memref<1x8xf32, #tpu.memory_space<vmem>>, vector<1x8xf32>
    %18 = vector.broadcast %17 : vector<1x8xf32> to vector<128x8xf32>
    %19 = arith.mulf %16, %18 : vector<128x8xf32>
    %c0_7 = arith.constant 0 : index
    %c0_8 = arith.constant 0 : index
    %20 = vector.load %arg3[%c0_7, %c0_8] : memref<1x8xf32, #tpu.memory_space<vmem>>, vector<1x8xf32>
    %21 = vector.broadcast %20 : vector<1x8xf32> to vector<128x8xf32>
    %22 = arith.addf %19, %21 : vector<128x8xf32>
    %23 = arith.truncf %22 : vector<128x8xf32> to vector<128x8xbf16>
    %c0_9 = arith.constant 0 : index
    %c0_10 = arith.constant 0 : index
    %24 = vector.load %arg4[%c0_9, %c0_10] : memref<8x32xbf16, #tpu.memory_space<vmem>>, vector<8x32xbf16>
    %cst_11 = arith.constant dense<0.000000e+00> : vector<128x32xf32>
    %25 = tpu.matmul %23, %24, %cst_11 {dimension_numbers = #tpu.dot_dimension_numbers<[1], [0], [0], [1], [0, 0, 1, 1], [], []>} : vector<128x8xbf16>, vector<8x32xbf16>, vector<128x32xf32> -> vector<128x32xf32>
    %c0_12 = arith.constant 0 : index
    %c0_13 = arith.constant 0 : index
    %26 = vector.load %arg5[%c0_12, %c0_13] : memref<1x32xf32, #tpu.memory_space<vmem>>, vector<1x32xf32>
    %27 = vector.broadcast %26 : vector<1x32xf32> to vector<128x32xf32>
    %28 = arith.addf %25, %27 : vector<128x32xf32>
    %29 = arith.truncf %28 : vector<128x32xf32> to vector<128x32xbf16>
    %c0_14 = arith.constant 0 : index
    %c0_15 = arith.constant 0 : index
    %30 = vector.load %arg6[%c0_14, %c0_15] : memref<128x32xbf16, #tpu.memory_space<vmem>>, vector<128x32xbf16>
    tpu.vector_store %arg6[%c0_14, %c0_15], %29 {strides = array<i32>} : memref<128x32xbf16, #tpu.memory_space<vmem>>, vector<128x32xbf16>,
    return
  }
  func.func @transform_0(%arg0: i32) -> (i32, i32) {
    %c0_i32 = arith.constant 0 : i32
    %c0_i32_0 = arith.constant 0 : i32
    return %arg0, %c0_i32 : i32, i32
  }
  func.func @transform_1(%arg0: i32) -> (i32, i32) {
    %c0_i32 = arith.constant 0 : i32
    %c0_i32_0 = arith.constant 0 : i32
    %c0_i32_1 = arith.constant 0 : i32
    return %c0_i32, %c0_i32_0 : i32, i32
  }
  func.func @transform_2(%arg0: i32) -> (i32, i32) {
    %c0_i32 = arith.constant 0 : i32
    %c0_i32_0 = arith.constant 0 : i32
    %c0_i32_1 = arith.constant 0 : i32
    return %c0_i32, %c0_i32_0 : i32, i32
  }
  func.func @transform_3(%arg0: i32) -> (i32, i32) {
    %c0_i32 = arith.constant 0 : i32
    %c0_i32_0 = arith.constant 0 : i32
    %c0_i32_1 = arith.constant 0 : i32
    return %c0_i32, %c0_i32_0 : i32, i32
  }
  func.func @transform_4(%arg0: i32) -> (i32, i32) {
    %c0_i32 = arith.constant 0 : i32
    %c0_i32_0 = arith.constant 0 : i32
    %c0_i32_1 = arith.constant 0 : i32
    return %c0_i32, %c0_i32_0 : i32, i32
  }
  func.func @transform_5(%arg0: i32) -> (i32, i32) {
    %c0_i32 = arith.constant 0 : i32
    %c0_i32_0 = arith.constant 0 : i32
    return %arg0, %c0_i32 : i32, i32
  }
}

</mosaic_0001>

<llo_original>
// kernel: tpu_custom_call.1
$region0: #{tpu_custom_call.1}
  #allocation0 [shape = 'u32[]', space=smem, size = 0x4, offset = 0x4, fixed_abs, tag = 'smem constant byte address 0x4 - core index']
  #allocation1 [shape = 'u32[72,128]{1,0:T(1,128)}', space=vmem, size = 0x9000, scoped, tag = 'internal scratch']
  %s0 = inlined_call_operand.vmem [shape: f32[128,8], index: 0, kind: input, shape index: {}]
  %s1 = inlined_call_operand.vmem [shape: f32[1,8], index: 1, kind: input, shape index: {}]
  %s2 = inlined_call_operand.vmem [shape: f32[1,8], index: 2, kind: input, shape index: {}]
  %s3 = inlined_call_operand.vmem [shape: bf16[8,32], index: 3, kind: input, shape index: {}]
  %s4 = inlined_call_operand.vmem [shape: f32[1,32], index: 4, kind: input, shape index: {}]
  %s5 = inlined_call_operand.vmem [shape: bf16[128,32], index: 5, kind: output, shape index: {}]
  %s6 = sld [smem:[#allocation0]]
  $region30: #{tpu_custom_call.1} parent=0
    _
  %s8 = ssub.s32 1, %s6
  %s9 = scalar_select 0, %s8, %s6
  // Predicated region
  $region2: #{tpu_custom_call.1} parent=0 // pred_check
    _
  $region3: #{tpu_custom_call.1} parent=0 // pred_check_branch
    %11 = sbr.rel (0) target = $region5
  $region4: #{tpu_custom_call.1} parent=0 // pred_region
    _
  $region5: #{tpu_custom_call.1} parent=0 // pred_fallthru
    _
  // Predicated region
  $region6: #{tpu_custom_call.1} parent=0 // pred_check
    _
  $region7: #{tpu_custom_call.1} parent=0 // pred_check_branch
    %13 = sbr.rel (0) target = $region9
  $region8: #{tpu_custom_call.1} parent=0 // pred_region
    _
  $region9: #{tpu_custom_call.1} parent=0 // pred_fallthru
    _
  // Predicated region
  $region10: #{tpu_custom_call.1} parent=0 // pred_check
    _
  $region11: #{tpu_custom_call.1} parent=0 // pred_check_branch
    %15 = sbr.rel (0) target = $region13
  $region12: #{tpu_custom_call.1} parent=0 // pred_region
    _
  $region13: #{tpu_custom_call.1} parent=0 // pred_fallthru
    _
  // Predicated region
  $region14: #{tpu_custom_call.1} parent=0 // pred_check
    _
  $region15: #{tpu_custom_call.1} parent=0 // pred_check_branch
    %17 = sbr.rel (0) target = $region17
  $region16: #{tpu_custom_call.1} parent=0 // pred_region
    _
  $region17: #{tpu_custom_call.1} parent=0 // pred_fallthru
    _
  // Predicated region
  $region18: #{tpu_custom_call.1} parent=0 // pred_check
    _
  $region19: #{tpu_custom_call.1} parent=0 // pred_check_branch
    %19 = sbr.rel (0) target = $region21
  $region20: #{tpu_custom_call.1} parent=0 // pred_region
    _
  $region21: #{tpu_custom_call.1} parent=0 // pred_fallthru
    _
  %v21 = vld [vmem:[%s0] sm:$0xff]
  %v22 = vld [vmem:[%s0 + $0x8] sm:$0xff]
  %v23 = vld [vmem:[%s0 + $0x10] sm:$0xff]
  %v24 = vld [vmem:[%s0 + $0x18] sm:$0xff]
  %v25 = vld [vmem:[%s0 + $0x20] sm:$0xff]
  %v26 = vld [vmem:[%s0 + $0x28] sm:$0xff]
  %v27 = vld [vmem:[%s0 + $0x30] sm:$0xff]
  %v28 = vld [vmem:[%s0 + $0x38] sm:$0xff]
  %v29 = vld [vmem:[%s0 + $0x40] sm:$0xff]
  %v30 = vld [vmem:[%s0 + $0x48] sm:$0xff]
  %v31 = vld [vmem:[%s0 + $0x50] sm:$0xff]
  %v32 = vld [vmem:[%s0 + $0x58] sm:$0xff]
  %v33 = vld [vmem:[%s0 + $0x60] sm:$0xff]
  %v34 = vld [vmem:[%s0 + $0x68] sm:$0xff]
  %v35 = vld [vmem:[%s0 + $0x70] sm:$0xff]
  %v36 = vld [vmem:[%s0 + $0x78] sm:$0xff]
  %vm37 = vcmask 64512
  %v38 = vsel %vm37, %v21, 0.0
  %39 = vadd.xlane.f32.xlu0 %v38
  %v40 = vpop.xlane.xlu0 %39
  %v41 = vsel %vm37, %v22, 0.0
  %42 = vadd.xlane.f32.xlu0 %v41
  %v43 = vpop.xlane.xlu0 %42
  %v44 = vsel %vm37, %v23, 0.0
  %45 = vadd.xlane.f32.xlu0 %v44
  %v46 = vpop.xlane.xlu0 %45
  %v47 = vsel %vm37, %v24, 0.0
  %48 = vadd.xlane.f32.xlu0 %v47
  %v49 = vpop.xlane.xlu0 %48
  %v50 = vsel %vm37, %v25, 0.0
  %51 = vadd.xlane.f32.xlu0 %v50
  %v52 = vpop.xlane.xlu0 %51
  %v53 = vsel %vm37, %v26, 0.0
  %54 = vadd.xlane.f32.xlu0 %v53
  %v55 = vpop.xlane.xlu0 %54
  %v56 = vsel %vm37, %v27, 0.0
  %57 = vadd.xlane.f32.xlu0 %v56
  %v58 = vpop.xlane.xlu0 %57
  %v59 = vsel %vm37, %v28, 0.0
  %60 = vadd.xlane.f32.xlu0 %v59
  %v61 = vpop.xlane.xlu0 %60
  %v62 = vsel %vm37, %v29, 0.0
  %63 = vadd.xlane.f32.xlu0 %v62
  %v64 = vpop.xlane.xlu0 %63
  %v65 = vsel %vm37, %v30, 0.0
  %66 = vadd.xlane.f32.xlu0 %v65
  %v67 = vpop.xlane.xlu0 %66
  %v68 = vsel %vm37, %v31, 0.0
  %69 = vadd.xlane.f32.xlu0 %v68
  %v70 = vpop.xlane.xlu0 %69
  %v71 = vsel %vm37, %v32, 0.0
  %72 = vadd.xlane.f32.xlu0 %v71
  %v73 = vpop.xlane.xlu0 %72
  %v74 = vsel %vm37, %v33, 0.0
  %75 = vadd.xlane.f32.xlu0 %v74
  %v76 = vpop.xlane.xlu0 %75
  %v77 = vsel %vm37, %v34, 0.0
  %78 = vadd.xlane.f32.xlu0 %v77
  %v79 = vpop.xlane.xlu0 %78
  %v80 = vsel %vm37, %v35, 0.0
  %81 = vadd.xlane.f32.xlu0 %v80
  %v82 = vpop.xlane.xlu0 %81
  %v83 = vsel %vm37, %v36, 0.0
  %84 = vadd.xlane.f32.xlu0 %v83
  %v85 = vpop.xlane.xlu0 %84
  %v86 = vrcp.pop 8.0
  %v87 = vmul.f32 8.0, %v86
  %v88 = vsub.f32 1.0, %v87
  %v89 = vmul.f32 %v86, %v88
  %v90 = vadd.f32 %v86, %v89
  %vm91 = vweird.f32 %v86
  %v92 = vsel %vm91, %v86, %v90
  %v93 = vmul.f32 %v40, %v92
  %v94 = vmul.f32 %v43, %v92
  %v95 = vmul.f32 %v46, %v92
  %v96 = vmul.f32 %v49, %v92
  %v97 = vmul.f32 %v52, %v92
  %v98 = vmul.f32 %v55, %v92
  %v99 = vmul.f32 %v58, %v92
  %v100 = vmul.f32 %v61, %v92
  %v101 = vmul.f32 %v64, %v92
  %v102 = vmul.f32 %v67, %v92
  %v103 = vmul.f32 %v70, %v92
  %v104 = vmul.f32 %v73, %v92
  %v105 = vmul.f32 %v76, %v92
  %v106 = vmul.f32 %v79, %v92
  %v107 = vmul.f32 %v82, %v92
  %v108 = vmul.f32 %v85, %v92
  %v109 = vsub.f32 %v21, %v93
  %v110 = vsub.f32 %v22, %v94
  %v111 = vsub.f32 %v23, %v95
  %v112 = vsub.f32 %v24, %v96
  %v113 = vsub.f32 %v25, %v97
  %v114 = vsub.f32 %v26, %v98
  %v115 = vsub.f32 %v27, %v99
  %v116 = vsub.f32 %v28, %v100
  %v117 = vsub.f32 %v29, %v101
  %v118 = vsub.f32 %v30, %v102
  %v119 = vsub.f32 %v31, %v103
  %v120 = vsub.f32 %v32, %v104
  %v121 = vsub.f32 %v33, %v105
  %v122 = vsub.f32 %v34, %v106
  %v123 = vsub.f32 %v35, %v107
  %v124 = vsub.f32 %v36, %v108
  %v125 = vmul.f32 %v109, %v109
  %v126 = vmul.f32 %v110, %v110
  %v127 = vmul.f32 %v111, %v111
  %v128 = vmul.f32 %v112, %v112
  %v129 = vmul.f32 %v113, %v113
  %v130 = vmul.f32 %v114, %v114
  %v131 = vmul.f32 %v115, %v115
  %v132 = vmul.f32 %v116, %v116
  %v133 = vmul.f32 %v117, %v117
  %v134 = vmul.f32 %v118, %v118
  %v135 = vmul.f32 %v119, %v119
  %v136 = vmul.f32 %v120, %v120
  %v137 = vmul.f32 %v121, %v121
  %v138 = vmul.f32 %v122, %v122
  %v139 = vmul.f32 %v123, %v123
  %v140 = vmul.f32 %v124, %v124
  %v141 = vsel %vm37, %v125, 0.0
  %142 = vadd.xlane.f32.xlu0 %v141
  %v143 = vpop.xlane.xlu0 %142
  %v144 = vsel %vm37, %v126, 0.0
  %145 = vadd.xlane.f32.xlu0 %v144
  %v146 = vpop.xlane.xlu0 %145
  %v147 = vsel %vm37, %v127, 0.0
  %148 = vadd.xlane.f32.xlu0 %v147
  %v149 = vpop.xlane.xlu0 %148
  %v150 = vsel %vm37, %v128, 0.0
  %151 = vadd.xlane.f32.xlu0 %v150
  %v152 = vpop.xlane.xlu0 %151
  %v153 = vsel %vm37, %v129, 0.0
  %154 = vadd.xlane.f32.xlu0 %v153
  %v155 = vpop.xlane.xlu0 %154
  %v156 = vsel %vm37, %v130, 0.0
  %157 = vadd.xlane.f32.xlu0 %v156
  %v158 = vpop.xlane.xlu0 %157
  %v159 = vsel %vm37, %v131, 0.0
  %160 = vadd.xlane.f32.xlu0 %v159
  %v161 = vpop.xlane.xlu0 %160
  %v162 = vsel %vm37, %v132, 0.0
  %163 = vadd.xlane.f32.xlu0 %v162
  %v164 = vpop.xlane.xlu0 %163
  %v165 = vsel %vm37, %v133, 0.0
  %166 = vadd.xlane.f32.xlu0 %v165
  %v167 = vpop.xlane.xlu0 %166
  %v168 = vsel %vm37, %v134, 0.0
  %169 = vadd.xlane.f32.xlu0 %v168
  %v170 = vpop.xlane.xlu0 %169
  %v171 = vsel %vm37, %v135, 0.0
  %172 = vadd.xlane.f32.xlu0 %v171
  %v173 = vpop.xlane.xlu0 %172
  %v174 = vsel %vm37, %v136, 0.0
  %175 = vadd.xlane.f32.xlu0 %v174
  %v176 = vpop.xlane.xlu0 %175
  %v177 = vsel %vm37, %v137, 0.0
  %178 = vadd.xlane.f32.xlu0 %v177
  %v179 = vpop.xlane.xlu0 %178
  %v180 = vsel %vm37, %v138, 0.0
  %181 = vadd.xlane.f32.xlu0 %v180
  %v182 = vpop.xlane.xlu0 %181
  %v183 = vsel %vm37, %v139, 0.0
  %184 = vadd.xlane.f32.xlu0 %v183
  %v185 = vpop.xlane.xlu0 %184
  %v186 = vsel %vm37, %v140, 0.0
  %187 = vadd.xlane.f32.xlu0 %v186
  %v188 = vpop.xlane.xlu0 %187
  %v189 = vmul.f32 %v143, %v92
  %v190 = vmul.f32 %v146, %v92
  %v191 = vmul.f32 %v149, %v92
  %v192 = vmul.f32 %v152, %v92
  %v193 = vmul.f32 %v155, %v92
  %v194 = vmul.f32 %v158, %v92
  %v195 = vmul.f32 %v161, %v92
  %v196 = vmul.f32 %v164, %v92
  %v197 = vmul.f32 %v167, %v92
  %v198 = vmul.f32 %v170, %v92
  %v199 = vmul.f32 %v173, %v92
  %v200 = vmul.f32 %v176, %v92
  %v201 = vmul.f32 %v179, %v92
  %v202 = vmul.f32 %v182, %v92
  %v203 = vmul.f32 %v185, %v92
  %v204 = vmul.f32 %v188, %v92
  %v205 = vadd.f32 %v189, 1e-05
  %v206 = vadd.f32 %v190, 1e-05
  %v207 = vadd.f32 %v191, 1e-05
  %v208 = vadd.f32 %v192, 1e-05
  %v209 = vadd.f32 %v193, 1e-05
  %v210 = vadd.f32 %v194, 1e-05
  %v211 = vadd.f32 %v195, 1e-05
  %v212 = vadd.f32 %v196, 1e-05
  %v213 = vadd.f32 %v197, 1e-05
  %v214 = vadd.f32 %v198, 1e-05
  %v215 = vadd.f32 %v199, 1e-05
  %v216 = vadd.f32 %v200, 1e-05
  %v217 = vadd.f32 %v201, 1e-05
  %v218 = vadd.f32 %v202, 1e-05
  %v219 = vadd.f32 %v203, 1e-05
  %v220 = vadd.f32 %v204, 1e-05
  %v221 = vrsqrt.pop %v205
  %v222 = vmul.f32 %v221, %v205
  %v223 = vmul.f32 %v222, %v221
  %v224 = vmul.f32 0.5, %v223
  %v225 = vsub.f32 1.5, %v224
  %v226 = vmul.f32 %v221, %v225
  %vm227 = vweird.f32 %v205
  %vm228 = vweird.f32 %v221
  %vm229 = vmor %vm227, %vm228
  %v230 = vsel %vm229, %v221, %v226
  %v231 = vrsqrt.pop %v206
  %v232 = vmul.f32 %v231, %v206
  %v233 = vmul.f32 %v232, %v231
  %v234 = vmul.f32 0.5, %v233
  %v235 = vsub.f32 1.5, %v234
  %v236 = vmul.f32 %v231, %v235
  %vm237 = vweird.f32 %v206
  %vm238 = vweird.f32 %v231
  %vm239 = vmor %vm237, %vm238
  %v240 = vsel %vm239, %v231, %v236
  %v241 = vrsqrt.pop %v207
  %v242 = vmul.f32 %v241, %v207
  %v243 = vmul.f32 %v242, %v241
  %v244 = vmul.f32 0.5, %v243
  %v245 = vsub.f32 1.5, %v244
  %v246 = vmul.f32 %v241, %v245
  %vm247 = vweird.f32 %v207
  %vm248 = vweird.f32 %v241
  %vm249 = vmor %vm247, %vm248
  %v250 = vsel %vm249, %v241, %v246
  %v251 = vrsqrt.pop %v208
  %v252 = vmul.f32 %v251, %v208
  %v253 = vmul.f32 %v252, %v251
  %v254 = vmul.f32 0.5, %v253
  %v255 = vsub.f32 1.5, %v254
  %v256 = vmul.f32 %v251, %v255
  %vm257 = vweird.f32 %v208
  %vm258 = vweird.f32 %v251
  %vm259 = vmor %vm257, %vm258
  %v260 = vsel %vm259, %v251, %v256
  %v261 = vrsqrt.pop %v209
  %v262 = vmul.f32 %v261, %v209
  %v263 = vmul.f32 %v262, %v261
  %v264 = vmul.f32 0.5, %v263
  %v265 = vsub.f32 1.5, %v264
  %v266 = vmul.f32 %v261, %v265
  %vm267 = vweird.f32 %v209
  %vm268 = vweird.f32 %v261
  %vm269 = vmor %vm267, %vm268
  %v270 = vsel %vm269, %v261, %v266
  %v271 = vrsqrt.pop %v210
  %v272 = vmul.f32 %v271, %v210
  %v273 = vmul.f32 %v272, %v271
  %v274 = vmul.f32 0.5, %v273
  %v275 = vsub.f32 1.5, %v274
  %v276 = vmul.f32 %v271, %v275
  %vm277 = vweird.f32 %v210
  %vm278 = vweird.f32 %v271
  %vm279 = vmor %vm277, %vm278
  %v280 = vsel %vm279, %v271, %v276
  %v281 = vrsqrt.pop %v211
  %v282 = vmul.f32 %v281, %v211
  %v283 = vmul.f32 %v282, %v281
  %v284 = vmul.f32 0.5, %v283
  %v285 = vsub.f32 1.5, %v284
  %v286 = vmul.f32 %v281, %v285
  %vm287 = vweird.f32 %v211
  %vm288 = vweird.f32 %v281
  %vm289 = vmor %vm287, %vm288
  %v290 = vsel %vm289, %v281, %v286
  %v291 = vrsqrt.pop %v212
  %v292 = vmul.f32 %v291, %v212
  %v293 = vmul.f32 %v292, %v291
  %v294 = vmul.f32 0.5, %v293
  %v295 = vsub.f32 1.5, %v294
  %v296 = vmul.f32 %v291, %v295
  %vm297 = vweird.f32 %v212
  %vm298 = vweird.f32 %v291
  %vm299 = vmor %vm297, %vm298
  %v300 = vsel %vm299, %v291, %v296
  %v301 = vrsqrt.pop %v213
  %v302 = vmul.f32 %v301, %v213
  %v303 = vmul.f32 %v302, %v301
  %v304 = vmul.f32 0.5, %v303
  %v305 = vsub.f32 1.5, %v304
  %v306 = vmul.f32 %v301, %v305
  %vm307 = vweird.f32 %v213
  %vm308 = vweird.f32 %v301
  %vm309 = vmor %vm307, %vm308
  %v310 = vsel %vm309, %v301, %v306
  %v311 = vrsqrt.pop %v214
  %v312 = vmul.f32 %v311, %v214
  %v313 = vmul.f32 %v312, %v311
  %v314 = vmul.f32 0.5, %v313
  %v315 = vsub.f32 1.5, %v314
  %v316 = vmul.f32 %v311, %v315
  %vm317 = vweird.f32 %v214
  %vm318 = vweird.f32 %v311
  %vm319 = vmor %vm317, %vm318
  %v320 = vsel %vm319, %v311, %v316
  %v321 = vrsqrt.pop %v215
  %v322 = vmul.f32 %v321, %v215
  %v323 = vmul.f32 %v322, %v321
  %v324 = vmul.f32 0.5, %v323
  %v325 = vsub.f32 1.5, %v324
  %v326 = vmul.f32 %v321, %v325
  %vm327 = vweird.f32 %v215
  %vm328 = vweird.f32 %v321
  %vm329 = vmor %vm327, %vm328
  %v330 = vsel %vm329, %v321, %v326
  %v331 = vrsqrt.pop %v216
  %v332 = vmul.f32 %v331, %v216
  %v333 = vmul.f32 %v332, %v331
  %v334 = vmul.f32 0.5, %v333
  %v335 = vsub.f32 1.5, %v334
  %v336 = vmul.f32 %v331, %v335
  %vm337 = vweird.f32 %v216
  %vm338 = vweird.f32 %v331
  %vm339 = vmor %vm337, %vm338
  %v340 = vsel %vm339, %v331, %v336
  %v341 = vrsqrt.pop %v217
  %v342 = vmul.f32 %v341, %v217
  %v343 = vmul.f32 %v342, %v341
  %v344 = vmul.f32 0.5, %v343
  %v345 = vsub.f32 1.5, %v344
  %v346 = vmul.f32 %v341, %v345
  %vm347 = vweird.f32 %v217
  %vm348 = vweird.f32 %v341
  %vm349 = vmor %vm347, %vm348
  %v350 = vsel %vm349, %v341, %v346
  %v351 = vrsqrt.pop %v218
  %v352 = vmul.f32 %v351, %v218
  %v353 = vmul.f32 %v352, %v351
  %v354 = vmul.f32 0.5, %v353
  %v355 = vsub.f32 1.5, %v354
  %v356 = vmul.f32 %v351, %v355
  %vm357 = vweird.f32 %v218
  %vm358 = vweird.f32 %v351
  %vm359 = vmor %vm357, %vm358
  %v360 = vsel %vm359, %v351, %v356
  %v361 = vrsqrt.pop %v219
  %v362 = vmul.f32 %v361, %v219
  %v363 = vmul.f32 %v362, %v361
  %v364 = vmul.f32 0.5, %v363
  %v365 = vsub.f32 1.5, %v364
  %v366 = vmul.f32 %v361, %v365
  %vm367 = vweird.f32 %v219
  %vm368 = vweird.f32 %v361
  %vm369 = vmor %vm367, %vm368
  %v370 = vsel %vm369, %v361, %v366
  %v371 = vrsqrt.pop %v220
  %v372 = vmul.f32 %v371, %v220
  %v373 = vmul.f32 %v372, %v371
  %v374 = vmul.f32 0.5, %v373
  %v375 = vsub.f32 1.5, %v374
  %v376 = vmul.f32 %v371, %v375
  %vm377 = vweird.f32 %v220
  %vm378 = vweird.f32 %v371
  %vm379 = vmor %vm377, %vm378
  %v380 = vsel %vm379, %v371, %v376
  %v381 = vmul.f32 %v109, %v230
  %v382 = vmul.f32 %v110, %v240
  %v383 = vmul.f32 %v111, %v250
  %v384 = vmul.f32 %v112, %v260
  %v385 = vmul.f32 %v113, %v270
  %v386 = vmul.f32 %v114, %v280
  %v387 = vmul.f32 %v115, %v290
  %v388 = vmul.f32 %v116, %v300
  %v389 = vmul.f32 %v117, %v310
  %v390 = vmul.f32 %v118, %v320
  %v391 = vmul.f32 %v119, %v330
  %v392 = vmul.f32 %v120, %v340
  %v393 = vmul.f32 %v121, %v350
  %v394 = vmul.f32 %v122, %v360
  %v395 = vmul.f32 %v123, %v370
  %v396 = vmul.f32 %v124, %v380
  %v397 = vld [vmem:[%s1] sm:$0x1]
  %v399 = vperm.slane %v397, 0
  %v401 = vmul.f32 %v381, %v399
  %v402 = vmul.f32 %v382, %v399
  %v403 = vmul.f32 %v383, %v399
  %v404 = vmul.f32 %v384, %v399
  %v405 = vmul.f32 %v385, %v399
  %v406 = vmul.f32 %v386, %v399
  %v407 = vmul.f32 %v387, %v399
  %v408 = vmul.f32 %v388, %v399
  %v409 = vmul.f32 %v389, %v399
  %v410 = vmul.f32 %v390, %v399
  %v411 = vmul.f32 %v391, %v399
  %v412 = vmul.f32 %v392, %v399
  %v413 = vmul.f32 %v393, %v399
  %v414 = vmul.f32 %v394, %v399
  %v415 = vmul.f32 %v395, %v399
  %v416 = vmul.f32 %v396, %v399
  %v417 = vld [vmem:[%s2] sm:$0x1]
  %v419 = vperm.slane %v417, 0
  %v421 = vadd.f32 %v401, %v419
  %v422 = vadd.f32 %v402, %v419
  %v423 = vadd.f32 %v403, %v419
  %v424 = vadd.f32 %v404, %v419
  %v425 = vadd.f32 %v405, %v419
  %v426 = vadd.f32 %v406, %v419
  %v427 = vadd.f32 %v407, %v419
  %v428 = vadd.f32 %v408, %v419
  %v429 = vadd.f32 %v409, %v419
  %v430 = vadd.f32 %v410, %v419
  %v431 = vadd.f32 %v411, %v419
  %v432 = vadd.f32 %v412, %v419
  %v433 = vadd.f32 %v413, %v419
  %v434 = vadd.f32 %v414, %v419
  %v435 = vadd.f32 %v415, %v419
  %v436 = vadd.f32 %v416, %v419
  %v437 = vpack.c.bf16 %v422, %v421
  %v438 = vpack.c.bf16 %v424, %v423
  %v439 = vpack.c.bf16 %v426, %v425
  %v440 = vpack.c.bf16 %v428, %v427
  %v441 = vpack.c.bf16 %v430, %v429
  %v442 = vpack.c.bf16 %v432, %v431
  %v443 = vpack.c.bf16 %v434, %v433
  %v444 = vpack.c.bf16 %v436, %v435
  %v445 = vld [vmem:[%s3] sm:$0xf]
  %v446 = vld [vmem:[%s4] sm:$0x1]
  %v448 = vperm.slane %v446, 0
  %v451 = vsel %vm37, %v437, 0
  %v454 = vsel %vm37, %v438, 0
  %v457 = vsel %vm37, %v439, 0
  %v460 = vsel %vm37, %v440, 0
  %v463 = vsel %vm37, %v441, 0
  %v466 = vsel %vm37, %v442, 0
  %v469 = vsel %vm37, %v443, 0
  %v472 = vsel %vm37, %v444, 0
  %vm474 = vcmask 1043456
  %v476 = vsel %vm474, %v445, 0
  %478 = vmatpush.bf16.msra.mxu0 0
  %479 = vmatpush.bf16.msra.mxu0 0
  %480 = vmatpush.bf16.msra.mxu0 0
  %481 = vmatpush.bf16.msra.mxu0 0
  %482 = vmatpush.bf16.msra.mxu0 0
  %483 = vmatpush.bf16.msra.mxu0 0
  %484 = vmatpush.bf16.msra.mxu0 0
  %485 = vmatpush.bf16.msra.mxu0 %v476
  %486 = vmatmul.bf16.gmra.mxu0 %v451
  %v487 = vpop.f32.mrf.mxu0
  %v488 = vadd.f32 %v448, %v487
  %v489 = vpop.f32.mrf.mxu0
  %v490 = vadd.f32 %v448, %v489
  %491 = vmatmul.bf16.gmra.mxu0 %v454
  %v492 = vpop.f32.mrf.mxu0
  %v493 = vadd.f32 %v448, %v492
  %v494 = vpop.f32.mrf.mxu0
  %v495 = vadd.f32 %v448, %v494
  %496 = vmatmul.bf16.gmra.mxu0 %v457
  %v497 = vpop.f32.mrf.mxu0
  %v498 = vadd.f32 %v448, %v497
  %v499 = vpop.f32.mrf.mxu0
  %v500 = vadd.f32 %v448, %v499
  %501 = vmatmul.bf16.gmra.mxu0 %v460
  %v502 = vpop.f32.mrf.mxu0
  %v503 = vadd.f32 %v448, %v502
  %v504 = vpop.f32.mrf.mxu0
  %v505 = vadd.f32 %v448, %v504
  %506 = vmatmul.bf16.gmra.mxu0 %v463
  %v507 = vpop.f32.mrf.mxu0
  %v508 = vadd.f32 %v448, %v507
  %v509 = vpop.f32.mrf.mxu0
  %v510 = vadd.f32 %v448, %v509
  %511 = vmatmul.bf16.gmra.mxu0 %v466
  %v512 = vpop.f32.mrf.mxu0
  %v513 = vadd.f32 %v448, %v512
  %v514 = vpop.f32.mrf.mxu0
  %v515 = vadd.f32 %v448, %v514
  %516 = vmatmul.bf16.gmra.mxu0 %v469
  %v517 = vpop.f32.mrf.mxu0
  %v518 = vadd.f32 %v448, %v517
  %v519 = vpop.f32.mrf.mxu0
  %v520 = vadd.f32 %v448, %v519
  %521 = vmatmul.bf16.gmra.mxu0 %v472
  %v522 = vpop.f32.mrf.mxu0
  %v523 = vadd.f32 %v448, %v522
  %v524 = vpop.f32.mrf.mxu0
  %v525 = vadd.f32 %v448, %v524
  %526 = vdwg.mxu0
  %v527 = vpack.c.bf16 %v488, %v488
  %v528 = vpack.c.bf16 %v490, %v490
  %v529 = vpack.c.bf16 %v493, %v493
  %v530 = vpack.c.bf16 %v495, %v495
  %v531 = vpack.c.bf16 %v498, %v498
  %v532 = vpack.c.bf16 %v500, %v500
  %v533 = vpack.c.bf16 %v503, %v503
  %v534 = vpack.c.bf16 %v505, %v505
  %v535 = vpack.c.bf16 %v508, %v508
  %v536 = vpack.c.bf16 %v510, %v510
  %v537 = vpack.c.bf16 %v513, %v513
  %v538 = vpack.c.bf16 %v515, %v515
  %v539 = vpack.c.bf16 %v518, %v518
  %v540 = vpack.c.bf16 %v520, %v520
  %v541 = vpack.c.bf16 %v523, %v523
  %v542 = vpack.c.bf16 %v525, %v525
  %vm543 = vcmask 257024
  %544 = vst.msk [vmem:[%s5] sm:$0xf] %vm543, %v527
  %545 = vst.msk [vmem:[%s5 + $0x4] sm:$0xf] %vm543, %v528
  %546 = vst.msk [vmem:[%s5 + $0x8] sm:$0xf] %vm543, %v529
  %547 = vst.msk [vmem:[%s5 + $0xc] sm:$0xf] %vm543, %v530
  %548 = vst.msk [vmem:[%s5 + $0x10] sm:$0xf] %vm543, %v531
  %549 = vst.msk [vmem:[%s5 + $0x14] sm:$0xf] %vm543, %v532
  %550 = vst.msk [vmem:[%s5 + $0x18] sm:$0xf] %vm543, %v533
  %551 = vst.msk [vmem:[%s5 + $0x1c] sm:$0xf] %vm543, %v534
  %552 = vst.msk [vmem:[%s5 + $0x20] sm:$0xf] %vm543, %v535
  %553 = vst.msk [vmem:[%s5 + $0x24] sm:$0xf] %vm543, %v536
  %554 = vst.msk [vmem:[%s5 + $0x28] sm:$0xf] %vm543, %v537
  %555 = vst.msk [vmem:[%s5 + $0x2c] sm:$0xf] %vm543, %v538
  %556 = vst.msk [vmem:[%s5 + $0x30] sm:$0xf] %vm543, %v539
  %557 = vst.msk [vmem:[%s5 + $0x34] sm:$0xf] %vm543, %v540
  %558 = vst.msk [vmem:[%s5 + $0x38] sm:$0xf] %vm543, %v541
  %559 = vst.msk [vmem:[%s5 + $0x3c] sm:$0xf] %vm543, %v542
  // Predicated region
  $region22: #{tpu_custom_call.1} parent=0 // pred_check
    _
  $region23: #{tpu_custom_call.1} parent=0 // pred_check_branch
    %561 = sbr.rel (0) target = $region25
  $region24: #{tpu_custom_call.1} parent=0 // pred_region
    _
  $region25: #{tpu_custom_call.1} parent=0 // pred_fallthru
    _
  // Predicated region
  $region26: #{tpu_custom_call.1} parent=0 // pred_check
    _
  $region27: #{tpu_custom_call.1} parent=0 // pred_check_branch
    %563 = sbr.rel (0) target = $region29
  $region28: #{tpu_custom_call.1} parent=0 // pred_region
    _
  $region29: #{tpu_custom_call.1} parent=0 // pred_fallthru
    _

</llo_original>
